<compile_context>
chip_gen: v5e
topology: v5e:2x2
jax: 0.10.0
libtpu: 0.0.40
codegen_flags: <defaults>
</compile_context>

<pallas_src>
import jax
import jax.numpy as jnp
import numpy as np
from jax.experimental import pallas as pl
from jax.experimental.pallas import tpu as pltpu


_LANE = 128
_N_PARALLEL = 2                   # v7x has 2 TensorCores; no-op (serial) on v5e/v6e.
_MAX_TN = 2048                    # lane-tile sweet spot for mem-bound kernels
_VMEM_BUDGET = 8 * 1024 * 1024    # conservative: fits every generation's scoped VMEM


def _round_up(x, m):
    return (x + m - 1) // m * m


def _choose_tile(b, n, itemsize):
    """Largest 128-multiple lane tile whose pipelined footprint fits the budget."""
    # 2 inputs x 2 pipeline buffers (input dtype) + 1 f32 accumulator, per lane column.
    bytes_per_lane_col = b * (4 * itemsize + 4)
    tn = (_VMEM_BUDGET // bytes_per_lane_col) // _LANE * _LANE
    tn = max(_LANE, min(_MAX_TN, tn))
    # Don't tile wider than each core's share of the data actually needs.
    need = _round_up(pl.cdiv(n, _N_PARALLEL), _LANE)
    return min(tn, need)


def _mse_sum_kernel(x_ref, y_ref, psum_ref, acc_ref):
    """Accumulate sum((x - y)^2) over the N axis, one (B, TN) tile per grid step."""
    k = pl.program_id(1)

    @pl.when(k == 0)
    def _init():
        acc_ref[...] = jnp.zeros_like(acc_ref)

    x = x_ref[...].astype(jnp.float32)
    y = y_ref[...].astype(jnp.float32)
    d = x - y
    acc_ref[...] += d * d          # pure VPU work in the steady state

    @pl.when(k == pl.num_programs(1) - 1)
    def _finalize():
        # Single cross-lane (XLU) reduction, done once in the epilogue.
        psum = jnp.sum(acc_ref[...], axis=1, keepdims=True)   # (B, 1)
        psum_ref[...] = psum[None, :, :]                       # (1, B, 1)


def _mse_pallas(x2, y2):
    """x2, y2: (B, N). Returns per-sample sum of squared error, shape (B,) f32."""
    B, N = x2.shape
    itemsize = jnp.dtype(x2.dtype).itemsize
    TN = _choose_tile(B, N, itemsize)
    P = _N_PARALLEL
    Np = _round_up(N, P * TN)
    if Np != N:
        pad = Np - N
        # Zero-pad both operands: (0 - 0)^2 contributes nothing to the sum.
        x2 = jnp.pad(x2, ((0, 0), (0, pad)))
        y2 = jnp.pad(y2, ((0, 0), (0, pad)))
    K = Np // (P * TN)

    in_spec = pl.BlockSpec((B, TN), lambda p, k: (0, p * K + k))
    out_spec = pl.BlockSpec((1, B, 1), lambda p, k: (p, 0, 0))

    psums = pl.pallas_call(
        _mse_sum_kernel,
        out_shape=jax.ShapeDtypeStruct((P, B, 1), jnp.float32),
        grid_spec=pltpu.PrefetchScalarGridSpec(
            num_scalar_prefetch=0,
            grid=(P, K),
            in_specs=[in_spec, in_spec],
            out_specs=out_spec,
            scratch_shapes=[pltpu.VMEM((B, TN), jnp.float32)],
        ),
        compiler_params=pltpu.CompilerParams(
            dimension_semantics=("parallel", "arbitrary"),
            vmem_limit_bytes=32 * 1024 * 1024,
        ),
        cost_estimate=pl.CostEstimate(
            flops=3 * B * Np,
            transcendentals=0,
            bytes_accessed=2 * B * Np * itemsize,
        ),
    )(x2, y2)

    # Combine the per-core partial sums (P, B, 1) -> (B,)
    return jnp.sum(psums[:, :, 0], axis=0)


def mse_loss(inp, target, keep_batch=False):
    """Pallas equivalent of MSELoss.forward."""
    assert inp.shape == target.shape, "MSELoss expects matching shapes"
    B = inp.shape[0]
    N = int(np.prod(inp.shape[1:]))
    x2 = inp.reshape(B, N)
    y2 = target.reshape(B, N)

    per_batch_sum = _mse_pallas(x2, y2)               # (B,) f32 sums
    per_batch = per_batch_sum / jnp.float32(N)        # per-sample mean over dims [1,2,3]

    out_dtype = inp.dtype
    if keep_batch:
        return per_batch.astype(out_dtype)            # shape (B,)
    # Global mean == mean of per-sample means (every sample shares the same N).
    return jnp.mean(per_batch).astype(out_dtype)      # scalar


if __name__ == "__main__":
    key = jax.random.PRNGKey(0)
    k1, k2 = jax.random.split(key)
    # NCHW: batch=2, channels=4, spatial=16x16
    x = jax.random.normal(k1, (2, 4, 16, 16), dtype=jnp.float32)
    t = jax.random.normal(k2, (2, 4, 16, 16), dtype=jnp.float32)

    scalar_loss = mse_loss(x, t, keep_batch=False)
    batch_loss = mse_loss(x, t, keep_batch=True)
    jax.block_until_ready(scalar_loss)
    jax.block_until_ready(batch_loss)

    # Lightweight sanity check against pure-JAX reference.
    ref_scalar = jnp.mean((x - t) ** 2)
    ref_batch = jnp.mean((x - t) ** 2, axis=(1, 2, 3))
    assert jnp.allclose(scalar_loss, ref_scalar, rtol=1e-5, atol=1e-6)
    assert jnp.allclose(batch_loss, ref_batch, rtol=1e-5, atol=1e-6)
    assert batch_loss.shape == (2,)
    assert scalar_loss.shape == ()

    # Also exercise a non-tile-multiple / bf16 path to cover padding + dtype handling.
    xb = jax.random.normal(k1, (2, 3, 17, 11), dtype=jnp.bfloat16)
    tb = jax.random.normal(k2, (2, 3, 17, 11), dtype=jnp.bfloat16)
    got = mse_loss(xb, tb, keep_batch=True).astype(jnp.float32)
    ref = jnp.mean((xb.astype(jnp.float32) - tb.astype(jnp.float32)) ** 2, axis=(1, 2, 3))
    assert jnp.allclose(got, ref, rtol=2e-2, atol=2e-2)

    print("KERNEL_OK")
</pallas_src>

<mosaic_0001>
module attributes {stable_mosaic.version = 11 : i64} {
  func.func @_mse_sum_kernel(%arg0: i32, %arg1: i32, %arg2: memref<2x512xf32, #tpu.memory_space<vmem>>, %arg3: memref<2x512xf32, #tpu.memory_space<vmem>>, %arg4: memref<1x2x1xf32, #tpu.memory_space<vmem>>, %arg5: memref<2x512xf32, #tpu.memory_space<vmem>>) attributes {dimension_semantics = [#tpu.dimension_semantics<parallel>, #tpu.dimension_semantics<arbitrary>], iteration_bounds = array<i64: 2, 1>, scalar_prefetch = 0 : i64, scratch_operands = 1 : i64, tpu.core_type = #tpu.core_type<tc>, window_params = [{transform_indices = @transform_0, window_bounds = array<i64: 2, 512>}, {transform_indices = @transform_1, window_bounds = array<i64: 2, 512>}, {transform_indices = @transform_2, window_bounds = array<i64: 1, 2, 1>}]} {
    %c0_i32 = arith.constant 0 : i32
    %0 = arith.cmpi eq, %arg1, %c0_i32 : i32
    %1 = arith.extui %0 : i1 to i32
    %c0_i32_0 = arith.constant 0 : i32
    %2 = arith.cmpi ne, %1, %c0_i32_0 : i32
    scf.if %2 {
      %cst = arith.constant 0.000000e+00 : f32
      %13 = vector.broadcast %cst : f32 to vector<2x512xf32>
      %c0_10 = arith.constant 0 : index
      %c0_11 = arith.constant 0 : index
      %14 = vector.load %arg5[%c0_10, %c0_11] : memref<2x512xf32, #tpu.memory_space<vmem>>, vector<2x512xf32>
      tpu.vector_store %arg5[%c0_10, %c0_11], %13 {strides = array<i32>} : memref<2x512xf32, #tpu.memory_space<vmem>>, vector<2x512xf32>,
    } else {
    }
    %c0 = arith.constant 0 : index
    %c0_1 = arith.constant 0 : index
    %3 = vector.load %arg2[%c0, %c0_1] : memref<2x512xf32, #tpu.memory_space<vmem>>, vector<2x512xf32>
    %c0_2 = arith.constant 0 : index
    %c0_3 = arith.constant 0 : index
    %4 = vector.load %arg3[%c0_2, %c0_3] : memref<2x512xf32, #tpu.memory_space<vmem>>, vector<2x512xf32>
    %5 = arith.subf %3, %4 : vector<2x512xf32>
    %c0_4 = arith.constant 0 : index
    %c0_5 = arith.constant 0 : index
    %6 = vector.load %arg5[%c0_4, %c0_5] : memref<2x512xf32, #tpu.memory_space<vmem>>, vector<2x512xf32>
    %7 = arith.mulf %5, %5 : vector<2x512xf32>
    %8 = arith.addf %6, %7 : vector<2x512xf32>
    %c0_6 = arith.constant 0 : index
    %c0_7 = arith.constant 0 : index
    %9 = vector.load %arg5[%c0_6, %c0_7] : memref<2x512xf32, #tpu.memory_space<vmem>>, vector<2x512xf32>
    tpu.vector_store %arg5[%c0_6, %c0_7], %8 {strides = array<i32>} : memref<2x512xf32, #tpu.memory_space<vmem>>, vector<2x512xf32>,
    %c0_i32_8 = arith.constant 0 : i32
    %10 = arith.cmpi eq, %arg1, %c0_i32_8 : i32
    %11 = arith.extui %10 : i1 to i32
    %c0_i32_9 = arith.constant 0 : i32
    %12 = arith.cmpi ne, %11, %c0_i32_9 : i32
    scf.if %12 {
      %c0_10 = arith.constant 0 : index
      %c0_11 = arith.constant 0 : index
      %13 = vector.load %arg5[%c0_10, %c0_11] : memref<2x512xf32, #tpu.memory_space<vmem>>, vector<2x512xf32>
      %cst = arith.constant dense<0.000000e+00> : vector<2xf32>
      %14 = vector.multi_reduction <add>, %13, %cst [1] : vector<2x512xf32> to vector<2xf32>
      %15 = vector.shape_cast %14 : vector<2xf32> to vector<2x1xf32>
      %16 = vector.shape_cast %15 : vector<2x1xf32> to vector<1x2x1xf32>
      %c0_12 = arith.constant 0 : index
      %c0_13 = arith.constant 0 : index
      %c0_14 = arith.constant 0 : index
      %17 = vector.load %arg4[%c0_12, %c0_13, %c0_14] : memref<1x2x1xf32, #tpu.memory_space<vmem>>, vector<1x2x1xf32>
      tpu.vector_store %arg4[%c0_12, %c0_13, %c0_14], %16 {strides = array<i32>} : memref<1x2x1xf32, #tpu.memory_space<vmem>>, vector<1x2x1xf32>,
    } else {
    }
    return
  }
  func.func @transform_0(%arg0: i32, %arg1: i32) -> (i32, i32) {
    %c1_i32 = arith.constant 1 : i32
    %0 = arith.muli %arg0, %c1_i32 : i32
    %1 = arith.addi %0, %arg1 : i32
    %c0_i32 = arith.constant 0 : i32
    %c0_i32_0 = arith.constant 0 : i32
    return %c0_i32, %1 : i32, i32
  }
  func.func @transform_1(%arg0: i32, %arg1: i32) -> (i32, i32) {
    %c1_i32 = arith.constant 1 : i32
    %0 = arith.muli %arg0, %c1_i32 : i32
    %1 = arith.addi %0, %arg1 : i32
    %c0_i32 = arith.constant 0 : i32
    %c0_i32_0 = arith.constant 0 : i32
    return %c0_i32, %1 : i32, i32
  }
  func.func @transform_2(%arg0: i32, %arg1: i32) -> (i32, i32, i32) {
    %c0_i32 = arith.constant 0 : i32
    %c0_i32_0 = arith.constant 0 : i32
    %c0_i32_1 = arith.constant 0 : i32
    return %arg0, %c0_i32, %c0_i32_0 : i32, i32, i32
  }
}

</mosaic_0001>

<llo_original>
// kernel: tpu_custom_call.1
$region0: #{tpu_custom_call.1}
  #allocation0 [shape = 'u32[]', space=smem, size = 0x4, offset = 0x4, fixed_abs, tag = 'smem constant byte address 0x4 - core index']
  #allocation1 [shape = 'u32[72,128]{1,0:T(1,128)}', space=vmem, size = 0x9000, scoped, tag = 'internal scratch']
  #allocation2 [shape = 'f32[2,512]{1,0:T(2,128)}', space=vmem, size = 0x1000, scoped, tag = 'scratch operand']
  %s0 = inlined_call_operand.hbm [shape: f32[2,1024], index: 0, kind: input, shape index: {}]
  %s1 = inlined_call_operand.hbm [shape: f32[2,1024], index: 1, kind: input, shape index: {}]
  %s2 = inlined_call_operand.vmem [shape: f32[2,2,1], index: 2, kind: output, shape index: {}]
  %s3 = sld [smem:[#allocation0]]
  $region57: #{tpu_custom_call.1} parent=0
    _
  %s5 = ssub.s32 1, %s3
  %s6 = scalar_select 0, %s5, %s3
  $region1: #{tpu_custom_call.1} parent=0
    #allocation3 [shape = 'u8[8192]{0}', space=vmem, size = 0x2000, scoped, tag = 'input window, operand 0']
    #allocation4 [shape = 's32[2]{0}', space=sflag, size = 0x8, scoped, tag = 'scoped memory for tpu_custom_call.1']
    #allocation5 [shape = 'u8[8192]{0}', space=vmem, size = 0x2000, scoped, tag = 'input window, operand 1']
    #allocation6 [shape = 's32[2]{0}', space=sflag, size = 0x8, scoped, tag = 'scoped memory for tpu_custom_call.1']
    %7 = vsyncpa [#allocation4], 0
    %s8 = scalar_lea.sflag [#allocation4], 1
    %9 = vsyncpa %s8, 0
    %10 = vsyncpa [#allocation6], 0
    %s11 = scalar_lea.sflag [#allocation6], 1
    %12 = vsyncpa %s11, 0
    loop: start=0, step=1, limit=4
    $region2: #{tpu_custom_call.1} parent=1 // loop_pre_header
      _
    $region3: #{tpu_custom_call.1} parent=1 // loop_header
      %s14 = sphi 0, %s18
      %p15 = scmp.ge.s32.totalorder %s14, 4
      %s21 = sphi 0, %s33
      %s22 = sphi 0, %s29
      %s23 = sphi 0, %s21
      %s24 = sphi 0, %s22
      %s25 = sphi 0, %s23
      %s26 = sphi 0, %s24
      %s38 = sphi 0, %s40
      %s41 = sphi 0, %s38
      %s42 = sphi 0, %s41
      %s58 = sphi 0, %s42
      %s66 = sphi 0, %s68
      %s69 = sphi 0, %s66
      %s70 = sphi 0, %s69
      %s86 = sphi 0, %s70
      %s92 = sphi 0, %s94
      %s95 = sphi 0, %s92
      %s96 = sphi 0, %s95
      %s112 = sphi 0, %s96
    $region4: #{tpu_custom_call.1} parent=1 // loop_header_branch
      %17 = sbr.rel (%p15) target = $region8
    $region5: #{tpu_custom_call.1} parent=1 // loop_body
      %s19 = ssub.s32 %s14, 1
      %s20 = ssub.s32 %s14, 2
      %s27 = sadd.s32 1, %s22
      %p28 = scmp.ge.s32.totalorder %s27, 1
      %s29 = scalar_select %p28, 0, %s27
      %s30 = sadd.s32 1, %s21
      %s31 = scalar_select %p28, %s30, %s21
      %p32 = scmp.ge.s32.totalorder %s31, 2
      %s33 = scalar_select %p32, 0, %s31
      %s34 = sadd.s32 %s21, %s22
      %s35 = sadd.s32 %s33, %s29
      %s36 = ssub.s32 %s34, %s35
      %p37 = scmp.eq.s32.totalorder %s36, 0
      %s39 = sadd.s32 %s38, 1
      %s40 = scalar_select %p37, %s38, %s39
      %p43 = pneg %p37
      %p44 = scmp.eq.s32.totalorder %s14, 1
      %p45 = por %p43, %p44
      %p46 = scmp.ne.s32.totalorder %s38, %s41
      %p47 = scmp.eq.s32.totalorder %s14, 0
      %p48 = por %p46, %p47
      %p49 = scmp.ne.s32.totalorder %s38, %s41
      %p50 = scmp.eq.s32.totalorder %s19, 1
      %p51 = por %p49, %p50
      %p52 = scmp.ne.s32.totalorder %s41, %s42
      %p53 = scmp.eq.s32.totalorder %s19, 0
      %p54 = por %p52, %p53
      %p55 = scmp.ne.s32.totalorder %s41, %s42
      %p56 = scmp.eq.s32.totalorder %s20, 1
      %p57 = por %p55, %p56
      %p59 = scmp.ne.s32.totalorder %s42, %s58
      %p60 = scmp.eq.s32.totalorder %s20, 0
      %p61 = por %p59, %p60
      %s62 = sadd.s32 %s21, %s22
      %s63 = sadd.s32 %s33, %s29
      %s64 = ssub.s32 %s62, %s63
      %p65 = scmp.eq.s32.totalorder %s64, 0
      %s67 = sadd.s32 %s66, 1
      %s68 = scalar_select %p65, %s66, %s67
      %p71 = pneg %p65
      %p72 = scmp.eq.s32.totalorder %s14, 1
      %p73 = por %p71, %p72
      %p74 = scmp.ne.s32.totalorder %s66, %s69
      %p75 = scmp.eq.s32.totalorder %s14, 0
      %p76 = por %p74, %p75
      %p77 = scmp.ne.s32.totalorder %s66, %s69
      %p78 = scmp.eq.s32.totalorder %s19, 1
      %p79 = por %p77, %p78
      %p80 = scmp.ne.s32.totalorder %s69, %s70
      %p81 = scmp.eq.s32.totalorder %s19, 0
      %p82 = por %p80, %p81
      %p83 = scmp.ne.s32.totalorder %s69, %s70
      %p84 = scmp.eq.s32.totalorder %s20, 1
      %p85 = por %p83, %p84
      %p87 = scmp.ne.s32.totalorder %s70, %s86
      %p88 = scmp.eq.s32.totalorder %s20, 0
      %p89 = por %p87, %p88
      %s90 = ssub.s32 %s21, %s33
      %p91 = scmp.eq.s32.totalorder %s90, 0
      %s93 = sadd.s32 %s92, 1
      %s94 = scalar_select %p91, %s92, %s93
      %p97 = pneg %p91
      %p98 = scmp.eq.s32.totalorder %s14, 1
      %p99 = por %p97, %p98
      %p100 = scmp.ne.s32.totalorder %s92, %s95
      %p101 = scmp.eq.s32.totalorder %s14, 0
      %p102 = por %p100, %p101
      %p103 = scmp.ne.s32.totalorder %s92, %s95
      %p104 = scmp.eq.s32.totalorder %s19, 1
      %p105 = por %p103, %p104
      %p106 = scmp.ne.s32.totalorder %s95, %s96
      %p107 = scmp.eq.s32.totalorder %s19, 0
      %p108 = por %p106, %p107
      %p109 = scmp.ne.s32.totalorder %s95, %s96
      %p110 = scmp.eq.s32.totalorder %s20, 1
      %p111 = por %p109, %p110
      %p113 = scmp.ne.s32.totalorder %s96, %s112
      %p114 = scmp.eq.s32.totalorder %s20, 0
      %p115 = por %p113, %p114
      %p116 = scmp.le.s32.totalorder 1, %s14
      %p117 = scmp.lt.s32.totalorder %s14, 3
      %p118 = pnand %p116, %p117
      %p119 = pneg %p118
      // Predicated region
      $region9: #{tpu_custom_call.1} parent=5 // pred_check
        _
      $region10: #{tpu_custom_call.1} parent=5 // pred_check_branch
        %121 = sbr.rel (%p118) target = $region12
      $region11: #{tpu_custom_call.1} parent=5 // pred_region
        %s122 = ssub.s32 %s14, 1
      $region12: #{tpu_custom_call.1} parent=5 // pred_fallthru
        _
      %p123 = scmp.lt.s32.totalorder %s14, 2
      // Predicated region
      $region13: #{tpu_custom_call.1} parent=5 // pred_check
        %p124 = pneg %p123
      $region14: #{tpu_custom_call.1} parent=5 // pred_check_branch
        %126 = sbr.rel (%p124) target = $region16
      $region15: #{tpu_custom_call.1} parent=5 // pred_region
        // Predicated region
        $region17: #{tpu_custom_call.1} parent=15 // pred_check
          %p127 = pneg %p48
        $region18: #{tpu_custom_call.1} parent=15 // pred_check_branch
          %129 = sbr.rel (%p127) target = $region20
        $region19: #{tpu_custom_call.1} parent=15 // pred_region
          %s130 = sand.u32 %s38, 1
          %s131 = scalar_lea.sflag [#allocation4], %s130
          %s132 = sand.u32 %s38, 1
          %s133 = smul.addr %s132, 8
          %s134 = scalar_lea.vmem [#allocation3], %s133
          %s135 = sadd.s32 %s21, %s22
          %s136 = smul.u32 4, %s135
          %138 = vsyncadd %s131, 0
          %s139 = smul.addr %s136, 2
          %s140 = scalar_lea.hbm %s0, %s139
          %s142 = sshll.u32 %s140, 4
          %s143 = int_to_ptr.hbm [resolvable:$true] %s142
          %s144 = sshll.u32 %s134, 4
          %s145 = int_to_ptr.vmem [resolvable:$true] %s144
          %147 = dma.hbm_to_vmem [thread:$0]  %s143, 128, %s145, %s131
        $region20: #{tpu_custom_call.1} parent=15 // pred_fallthru
          _
        // Predicated region
        $region21: #{tpu_custom_call.1} parent=15 // pred_check
          %p148 = pneg %p76
        $region22: #{tpu_custom_call.1} parent=15 // pred_check_branch
          %150 = sbr.rel (%p148) target = $region24
        $region23: #{tpu_custom_call.1} parent=15 // pred_region
          %s151 = sand.u32 %s66, 1
          %s152 = scalar_lea.sflag [#allocation6], %s151
          %s153 = sand.u32 %s66, 1
          %s154 = smul.addr %s153, 8
          %s155 = scalar_lea.vmem [#allocation5], %s154
          %s156 = sadd.s32 %s21, %s22
          %s157 = smul.u32 4, %s156
          %159 = vsyncadd %s152, 0
          %s160 = smul.addr %s157, 2
          %s161 = scalar_lea.hbm %s1, %s160
          %s163 = sshll.u32 %s161, 4
          %s164 = int_to_ptr.hbm [resolvable:$true] %s163
          %s165 = sshll.u32 %s155, 4
          %s166 = int_to_ptr.vmem [resolvable:$true] %s165
          %168 = dma.hbm_to_vmem [thread:$0]  %s164, 128, %s166, %s152
        $region24: #{tpu_custom_call.1} parent=15 // pred_fallthru
          _
      $region16: #{tpu_custom_call.1} parent=5 // pred_fallthru
        _
      %p169 = scmp.le.s32.totalorder 1, %s14
      %p170 = scmp.lt.s32.totalorder %s14, 3
      %p171 = pnand %p169, %p170
      %p172 = pneg %p171
      // Predicated region
      $region25: #{tpu_custom_call.1} parent=5 // pred_check
        _
      $region26: #{tpu_custom_call.1} parent=5 // pred_check_branch
        %174 = sbr.rel (%p171) target = $region28
      $region27: #{tpu_custom_call.1} parent=5 // pred_region
        %s175 = ssub.s32 %s14, 1
        %s176 = sand.u32 %s41, 1
        %s177 = scalar_lea.sflag [#allocation4], %s176
        %s178 = sand.u32 %s41, 1
        %s179 = smul.addr %s178, 8
        %s180 = scalar_lea.vmem [#allocation3], %s179
        // Predicated region
        $region29: #{tpu_custom_call.1} parent=27 // pred_check
          %p181 = pneg %p54
        $region30: #{tpu_custom_call.1} parent=27 // pred_check_branch
          %183 = sbr.rel (%p181) target = $region32
        $region31: #{tpu_custom_call.1} parent=27 // pred_region
          %185 = dma.done %s177, 128
        $region32: #{tpu_custom_call.1} parent=27 // pred_fallthru
          _
        %s186 = sand.u32 %s69, 1
        %s187 = scalar_lea.sflag [#allocation6], %s186
        %s188 = sand.u32 %s69, 1
        %s189 = smul.addr %s188, 8
        %s190 = scalar_lea.vmem [#allocation5], %s189
        // Predicated region
        $region33: #{tpu_custom_call.1} parent=27 // pred_check
          %p191 = pneg %p82
        $region34: #{tpu_custom_call.1} parent=27 // pred_check_branch
          %193 = sbr.rel (%p191) target = $region36
        $region35: #{tpu_custom_call.1} parent=27 // pred_region
          %195 = dma.done %s187, 128
        $region36: #{tpu_custom_call.1} parent=27 // pred_fallthru
          _
        %s196 = sand.u32 %s41, 1
        %s197 = scalar_lea.sflag [#allocation4], %s196
        %s198 = sand.u32 %s41, 1
        %s199 = smul.addr %s198, 8
        %s200 = scalar_lea.vmem [#allocation3], %s199
        %p201 = pneg %p54
        %p202 = pneg %p51
        %s203 = sand.u32 %s69, 1
        %s204 = scalar_lea.sflag [#allocation6], %s203
        %s205 = sand.u32 %s69, 1
        %s206 = smul.addr %s205, 8
        %s207 = scalar_lea.vmem [#allocation5], %s206
        %p208 = pneg %p82
        %p209 = pneg %p79
        %p210 = pneg %p108
        %p211 = pneg %p105
        %p212 = scmp.lt.s32.totalorder %s23, 1
        %s213 = scalar_select %p212, %s23, 1
        %s214 = smul.addr %s213, 2
        %s215 = scalar_lea.vmem %s2, %s214
        %s216 = sadd.s32 %s23, %s24
        %s217 = smul.u32 4, %s216
        %s218 = sadd.s32 %s23, %s24
        %s219 = smul.u32 4, %s218
        %p220 = scmp.lt.s32.totalorder %s23, 1
        %s221 = scalar_select %p220, %s23, 1
        %s222 = smul.addr %s221, 2
        %s223 = scalar_lea.vmem %s2, %s222
        %p224 = scmp.eq.s32.totalorder %s24, 0
        // Predicated region
        $region37: #{tpu_custom_call.1} parent=27 // pred_check
          %p225 = pneg %p224
        $region38: #{tpu_custom_call.1} parent=27 // pred_check_branch
          %227 = sbr.rel (%p225) target = $region40
        $region39: #{tpu_custom_call.1} parent=27 // pred_region
          %228 = vst [vmem:[#allocation2] sm:$0xff] 0.0
        $region40: #{tpu_custom_call.1} parent=27 // pred_fallthru
          _
        %v229 = vld [vmem:[%s180] sm:$0xff]
        %v230 = vld [vmem:[%s190] sm:$0xff]
        %v231 = vsub.f32 %v229, %v230
        %v232 = vld [vmem:[#allocation2] sm:$0xff]
        %v233 = vmul.f32 %v231, %v231
        %v234 = vadd.f32 %v232, %v233
        %235 = vst [vmem:[#allocation2] sm:$0xff] %v234
        // Predicated region
        $region41: #{tpu_custom_call.1} parent=27 // pred_check
          %p236 = pneg %p224
        $region42: #{tpu_custom_call.1} parent=27 // pred_check_branch
          %238 = sbr.rel (%p236) target = $region44
        $region43: #{tpu_custom_call.1} parent=27 // pred_region
          %v239 = vld [vmem:[#allocation2] sm:$0xff]
          %241 = vst [vmem:[#allocation1] ss:$4 sm:$0xff] %v239
          %v242 = vld.sshfl [vmem:[#allocation1] sm:$0xff pattern:$0x73625140]
          %v243 = vld.sshfl [vmem:[#allocation1 + $0x8] sm:$0xff pattern:$0x73625140]
          %v244 = vld.sshfl [vmem:[#allocation1 + $0x10] sm:$0xff pattern:$0x73625140]
          %v245 = vld.sshfl [vmem:[#allocation1 + $0x18] sm:$0xff pattern:$0x73625140]
          %vm250 = vcmask 1041408
          %v251 = vsel %vm250, %v242, 0.0
          %v252 = vsel %vm250, %v243, 0.0
          %v253 = vadd.f32 %v251, %v252
          %v254 = vsel %vm250, %v244, 0.0
          %v255 = vadd.f32 %v253, %v254
          %v256 = vsel %vm250, %v245, 0.0
          %v257 = vadd.f32 %v255, %v256
          %258 = vadd.xlane.f32.xlu0 %v257
          %v259 = vpop.xlane.xlu0 %258
          %vm260 = vcmask 1024
          %261 = vst.msk [vmem:[%s223] sm:$0x3] %vm260, %v259
        $region44: #{tpu_custom_call.1} parent=27 // pred_fallthru
          _
        %p262 = scmp.lt.s32.totalorder %s23, 1
        %s263 = scalar_select %p262, %s23, 1
        %s264 = smul.addr %s263, 2
        %s265 = scalar_lea.vmem %s2, %s264
        // Predicated region
        $region45: #{tpu_custom_call.1} parent=27 // pred_check
          %p266 = pneg %p105
        $region46: #{tpu_custom_call.1} parent=27 // pred_check_branch
          %268 = sbr.rel (%p266) target = $region48
        $region47: #{tpu_custom_call.1} parent=27 // pred_region
          _
        $region48: #{tpu_custom_call.1} parent=27 // pred_fallthru
          _
      $region28: #{tpu_custom_call.1} parent=5 // pred_fallthru
        _
      %p269 = scmp.le.s32.totalorder 2, %s14
      // Predicated region
      $region49: #{tpu_custom_call.1} parent=5 // pred_check
        %p270 = pneg %p269
      $region50: #{tpu_custom_call.1} parent=5 // pred_check_branch
        %272 = sbr.rel (%p270) target = $region52
      $region51: #{tpu_custom_call.1} parent=5 // pred_region
        %s273 = ssub.s32 %s14, 2
        // Predicated region
        $region53: #{tpu_custom_call.1} parent=51 // pred_check
          %p274 = pneg %p111
        $region54: #{tpu_custom_call.1} parent=51 // pred_check_branch
          %276 = sbr.rel (%p274) target = $region56
        $region55: #{tpu_custom_call.1} parent=51 // pred_region
          %p277 = scmp.lt.s32.totalorder %s25, 1
          %s278 = scalar_select %p277, %s25, 1
          %s279 = smul.addr %s278, 2
          %s280 = scalar_lea.vmem %s2, %s279
        $region56: #{tpu_custom_call.1} parent=51 // pred_fallthru
          _
      $region52: #{tpu_custom_call.1} parent=5 // pred_fallthru
        _
    $region6: #{tpu_custom_call.1} parent=1 // loop_footer
      %s18 = sadd.s32 1, %s14
    $region7: #{tpu_custom_call.1} parent=1 // loop_footer_branch
      %13 = sbr.rel target = $region3
    $region8: #{tpu_custom_call.1} parent=1 // loop_exit
      _
    %281 = vsyncpa [#allocation4], 1
    %s282 = scalar_lea.sflag [#allocation4], 1
    %283 = vsyncpa %s282, 1
    %284 = vsyncpa [#allocation6], 1
    %s285 = scalar_lea.sflag [#allocation6], 1
    %286 = vsyncpa %s285, 1

</llo_original>
